<compile_context>
chip_gen: v7x
topology: tpu7x:2x2x1
jax: 0.10.0
libtpu: 0.0.40
codegen_flags: <defaults>
</compile_context>

<pallas_src>
import jax
import jax.numpy as jnp
from jax.experimental import pallas as pl
from jax.experimental.pallas import tpu as pltpu


def _chomp_copy_kernel(x_ref, o_ref):
    # Identity copy of one (TR, TL) tile.  Ragged edges (rows or lanes beyond
    # the real array extent) are padded on load and masked on store by Pallas.
    o_ref[...] = x_ref[...]


def _round_up(x: int, m: int) -> int:
    return ((x + m - 1) // m) * m


# Below this many output bytes the pallas_call fixed overhead dominates a
# mem-bound copy; use a plain XLA slice instead (it can also fuse downstream).
_FAST_PATH_MAX_BYTES = 4 * 1024 * 1024


def chomp1d(x: jax.Array, chomp_size: int, *, force_pallas: bool = False) -> jax.Array:
    """x: (N, C, L) -> (N, C, L - chomp_size), same dtype."""
    if chomp_size <= 0:
        # Documented divergence: PyTorch's x[..., :-0] returns an empty tensor;
        # that is never meaningful in TCN usage, so we raise instead.
        raise ValueError("chomp_size must be positive")
    n, c, l = x.shape
    l_out = l - chomp_size
    if l_out <= 0:
        raise ValueError("chomp_size must be smaller than the temporal length")

    rows = n * c
    itemsize = jnp.dtype(x.dtype).itemsize
    out_bytes = rows * l_out * itemsize

    # ---- Tile selection -----------------------------------------------------
    # Lane tile: multiple of 128, at most 2048.
    tl = min(_round_up(l_out, 128), 2048)
    # Row tile: multiple of the dtype's sublane packing (8 f32, 16 bf16, 32 i8).
    sublane = 8 * max(1, 4 // itemsize)
    tr = min(_round_up(rows, sublane), 1024)

    # Keep double-buffered input + output tiles (4 buffers) under ~8 MiB so the
    # plan is portable across v5e/v6e (128 MiB VMEM) and v7x (64 MiB VMEM/TC);
    # measured tiled-copy data shows 512+ lane tiles already reach ~85% of the
    # HBM roofline, so shrinking further costs essentially nothing.
    budget_bytes = 8 * 1024 * 1024
    while 4 * tr * tl * itemsize > budget_bytes and tr > sublane:
        tr = max(sublane, tr // 2)
    while 4 * tr * tl * itemsize > budget_bytes and tl > 128:
        tl = max(128, tl // 2)

    rows_blocks = pl.cdiv(rows, tr)
    lane_blocks = pl.cdiv(l_out, tl)

    # ---- Fast path ----------------------------------------------------------
    # Pure mem-bound copy: below ~4 MiB (or when the whole array is one block)
    # a hand-written kernel cannot beat an XLA slice that fuses into the
    # consumer, so skip the pallas_call entirely.
    if not force_pallas and (
        out_bytes < _FAST_PATH_MAX_BYTES or (rows_blocks == 1 and lane_blocks == 1)
    ):
        return x[:, :, :l_out]

    # ---- Pallas path --------------------------------------------------------
    x2 = x.reshape(rows, l)  # contiguous NCL -> (N*C, L) view, free in XLA

    # Megacore (v7x): put the grid axis with MORE blocks outermost so the
    # leading "parallel" axis shards across both TensorCores.  The index_map
    # always returns (row_block, lane_block) regardless of grid order.
    if rows_blocks >= lane_blocks:
        grid = (rows_blocks, lane_blocks)
        index_map = lambda i, j: (i, j)
    else:
        grid = (lane_blocks, rows_blocks)
        index_map = lambda j, i: (i, j)

    # Right-size the scoped VMEM: actual double-buffered footprint + headroom.
    footprint = 4 * tr * tl * itemsize
    vmem_limit = max(footprint + 2 * 1024 * 1024, 4 * 1024 * 1024)

    out2 = pl.pallas_call(
        _chomp_copy_kernel,
        out_shape=jax.ShapeDtypeStruct((rows, l_out), x.dtype),
        grid=grid,
        in_specs=[
            # Same block shape / index_map as the output: the kernel never
            # loads the chomped tail (except the <128-lane ragged edge).
            pl.BlockSpec((tr, tl), index_map),
        ],
        out_specs=pl.BlockSpec((tr, tl), index_map),
        compiler_params=pltpu.CompilerParams(
            dimension_semantics=("parallel", "parallel"),
            vmem_limit_bytes=vmem_limit,
        ),
        cost_estimate=pl.CostEstimate(
            flops=0,
            transcendentals=0,
            bytes_accessed=2 * rows * l_out * itemsize,
        ),
    )(x2)

    return out2.reshape(n, c, l_out)


if __name__ == "__main__":
    key = jax.random.PRNGKey(0)
    k0, k1, k2 = jax.random.split(key, 3)

    # 1) Small TCN-like shape, forced through the Pallas path: (batch, channels, seq_len).
    N, C, L = 2, 4, 16
    chomp_size = 3
    x = jax.random.normal(k0, (N, C, L), dtype=jnp.float32)

    y = jax.block_until_ready(chomp1d(x, chomp_size, force_pallas=True))
    y_ref = x[:, :, :-chomp_size]
    assert y.shape == (N, C, L - chomp_size), y.shape
    assert y.dtype == x.dtype
    assert jnp.array_equal(y, y_ref), "Pallas chomp output mismatch (f32)"

    # 2) Fast path (default) on the same small input: pure XLA slice.
    y_fast = jax.block_until_ready(chomp1d(x, chomp_size))
    assert y_fast.shape == (N, C, L - chomp_size)
    assert jnp.array_equal(y_fast, y_ref), "fast-path chomp output mismatch"

    # 3) Ragged-edge check through the Pallas path: rows (N*C=15) not a multiple
    #    of the sublane packing and L_out (33) not a multiple of 128, bf16.
    x_b = jax.random.normal(k1, (3, 5, 40), dtype=jnp.bfloat16)
    y_b = jax.block_until_ready(chomp1d(x_b, 7, force_pallas=True))
    assert y_b.shape == (3, 5, 33)
    assert jnp.array_equal(y_b, x_b[:, :, :-7]), "Pallas chomp output mismatch (bf16 ragged)"

    # 4) Longer sequence so the lane axis has >1 block: exercises the
    #    megacore grid-order swap (lane axis outermost when it has more blocks).
    x_c = jax.random.normal(k2, (2, 8, 4096), dtype=jnp.float32)
    y_c = jax.block_until_ready(chomp1d(x_c, 5, force_pallas=True))
    assert y_c.shape == (2, 8, 4091)
    assert jnp.array_equal(y_c, x_c[:, :, :-5]), "Pallas chomp output mismatch (multi-block)"

    print("KERNEL_OK")
</pallas_src>

<mosaic_0001>
module attributes {stable_mosaic.version = 11 : i64} {
  func.func @_chomp_copy_kernel(%arg0: i32, %arg1: i32, %arg2: memref<8x128xf32, #tpu.memory_space<vmem>>, %arg3: memref<8x128xf32, #tpu.memory_space<vmem>>) attributes {dimension_semantics = [#tpu.dimension_semantics<parallel>, #tpu.dimension_semantics<parallel>], iteration_bounds = array<i64: 1, 1>, scalar_prefetch = 0 : i64, scratch_operands = 0 : i64, tpu.core_type = #tpu.core_type<tc>, window_params = [{transform_indices = @transform_0, window_bounds = array<i64: 8, 128>}, {transform_indices = @transform_1, window_bounds = array<i64: 8, 128>}]} {
    %c0 = arith.constant 0 : index
    %c0_0 = arith.constant 0 : index
    %0 = vector.load %arg2[%c0, %c0_0] : memref<8x128xf32, #tpu.memory_space<vmem>>, vector<8x128xf32>
    %c0_1 = arith.constant 0 : index
    %c0_2 = arith.constant 0 : index
    %1 = vector.load %arg3[%c0_1, %c0_2] : memref<8x128xf32, #tpu.memory_space<vmem>>, vector<8x128xf32>
    tpu.vector_store %arg3[%c0_1, %c0_2], %0 {strides = array<i32>} : memref<8x128xf32, #tpu.memory_space<vmem>>, vector<8x128xf32>,
    return
  }
  func.func @transform_0(%arg0: i32, %arg1: i32) -> (i32, i32) {
    %c0_i32 = arith.constant 0 : i32
    return %arg0, %arg1 : i32, i32
  }
  func.func @transform_1(%arg0: i32, %arg1: i32) -> (i32, i32) {
    %c0_i32 = arith.constant 0 : i32
    return %arg0, %arg1 : i32, i32
  }
}

</mosaic_0001>

<llo_original>
// kernel: tpu_custom_call.1
$region0: #{tpu_custom_call.1}
  #allocation0 [shape = 'u32[]', space=smem, size = 0x4, offset = 0x4, fixed_abs, tag = 'smem constant byte address 0x4 - core index']
  #allocation1 [shape = 'u32[144,128]{1,0:T(1,128)}', space=vmem, size = 0x12000, scoped, tag = 'internal scratch']
  %s0 = inlined_call_operand.hbm [shape: f32[8,16], index: 0, kind: input, shape index: {}]
  %s1 = inlined_call_operand.hbm [shape: f32[8,13], index: 1, kind: output, shape index: {}]
  %s2 = sld [smem:[#allocation0]]
  $region18: #{tpu_custom_call.1} parent=0
    _
  %s4 = ssub.s32 1, %s2
  %s5 = scalar_select 0, %s4, %s2
  $region1: #{tpu_custom_call.1} parent=0
    #allocation2 [shape = 'u8[4096]{0}', space=vmem, size = 0x1000, scoped, tag = 'input window, operand 0, single buffered']
    #allocation3 [shape = 's32[1]{0}', space=sflag, size = 0x4, scoped, tag = 'scoped memory for tpu_custom_call.1']
    #allocation4 [shape = 's32[1]{0}', space=sflag, size = 0x4, scoped, tag = 'scoped memory for tpu_custom_call.1']
    #allocation5 [shape = 'u8[4096]{0}', space=vmem, size = 0x1000, scoped, tag = 'output window, operand 0, single buffered']
    %6 = vsyncpa [#allocation3], 0
    %7 = vsyncpa [#allocation4], 0
    // Predicated region
    $region2: #{tpu_custom_call.1} parent=1 // pred_check
      _
    $region3: #{tpu_custom_call.1} parent=1 // pred_check_branch
      %9 = sbr.rel (0) target = $region5
    $region4: #{tpu_custom_call.1} parent=1 // pred_region
      %s11 = ssub.s32 128, 128
      %12 = vsyncadd [#allocation3], %s11
      %s14 = sshll.u32 [#allocation2], 4
      %s15 = int_to_ptr.vmem [resolvable:$true] %s14
      %17 = dma.hbm_to_vmem [thread:$0]  %s0, 128, %s15, [#allocation3]
    $region5: #{tpu_custom_call.1} parent=1 // pred_fallthru
      _
    // Predicated region
    $region6: #{tpu_custom_call.1} parent=1 // pred_check
      _
    $region7: #{tpu_custom_call.1} parent=1 // pred_check_branch
      %19 = sbr.rel (0) target = $region9
    $region8: #{tpu_custom_call.1} parent=1 // pred_region
      %20 = dma.done [#allocation3], 128
    $region9: #{tpu_custom_call.1} parent=1 // pred_fallthru
      _
    %v21 = vld [vmem:[#allocation2] sm:$0xff]
    %22 = vst [vmem:[#allocation5] sm:$0xff] %v21
    // Predicated region
    $region10: #{tpu_custom_call.1} parent=1 // pred_check
      _
    $region11: #{tpu_custom_call.1} parent=1 // pred_check_branch
      %24 = sbr.rel (0) target = $region13
    $region12: #{tpu_custom_call.1} parent=1 // pred_region
      %s26 = ssub.s32 128, 128
      %27 = vsyncadd [#allocation4], %s26
      %s29 = sshll.u32 [#allocation5], 4
      %s30 = int_to_ptr.vmem [resolvable:$true] %s29
      %32 = dma.vmem_to_hbm [thread:$0]  %s30, 128, %s1, [#allocation4]
    $region13: #{tpu_custom_call.1} parent=1 // pred_fallthru
      _
    // Predicated region
    $region14: #{tpu_custom_call.1} parent=1 // pred_check
      _
    $region15: #{tpu_custom_call.1} parent=1 // pred_check_branch
      %34 = sbr.rel (0) target = $region17
    $region16: #{tpu_custom_call.1} parent=1 // pred_region
      %35 = dma.done [#allocation4], 128
    $region17: #{tpu_custom_call.1} parent=1 // pred_fallthru
      _
    %36 = vsyncpa [#allocation3], 1
    %37 = vsyncpa [#allocation4], 1

</llo_original>
